<compile_context>
chip_gen: v7x
topology: tpu7x:2x2x1
jax: 0.10.0
libtpu: 0.0.40
codegen_flags: <defaults>
</compile_context>

<pallas_src>
import functools

import jax
import jax.numpy as jnp
from jax.experimental import pallas as pl
from jax.experimental.pallas import tpu as pltpu

_LANE = 128
_MXU = 256                 # v6e/v7x systolic-array width
_SUBLANE = 8
_BATCH_TILE = 512          # rows per grid step for large batches
_VMEM_BUDGET = 40 << 20    # resident-weights budget (v7x: 64 MiB physical VMEM)
_NEG_PAD = -1e30           # last-layer bias pad -> exp(pad) == 0


def _round_up(x, m):
    return ((x + m - 1) // m) * m


def _pad_dim(d):
    # <=128 real features: one 128-lane vreg row (optimal for v5e's 128-wide
    # MXU). Wider layers: align to 256 so the v6e/v7x 256x256 MXU is filled
    # per pass (still a multiple of 128, so v5e remains legal).
    return _LANE if d <= _LANE else _round_up(d, _MXU)


def _fused_mlp_kernel(*refs, n_layers):
    # refs = (x_ref, w0_ref, b0_ref, ..., w_{L-1}_ref, b_{L-1}_ref, o_ref)
    x_ref = refs[0]
    o_ref = refs[-1]
    param_refs = refs[1:-1]

    h = x_ref[...]                                     # (TB, d0_pad) f32
    for i in range(n_layers):
        w_ref = param_refs[2 * i]                      # bf16, zero-padded
        b_ref = param_refs[2 * i + 1]                  # f32, (1, n_pad)
        # bf16 x bf16 on the MXU with f32 accumulation; bias add in f32.
        z = jnp.dot(h.astype(jnp.bfloat16), w_ref[...],
                    preferred_element_type=jnp.float32) + b_ref[...]
        if i < n_layers - 1:
            h = jnp.maximum(z, 0.0)                    # padded lanes stay exactly 0
        else:
            # Same softmax as the reference exp(Z)/sum(exp(Z)); the row-max
            # subtraction is mathematically identical and avoids exp overflow.
            # Padded output lanes carry z = -1e30 (bias pad) -> exp == 0, so
            # they vanish from the denominator with no in-kernel masking.
            m = jnp.max(z, axis=1, keepdims=True)
            ez = jnp.exp(z - m)
            denom = jnp.sum(ez, axis=1, keepdims=True)
            inv = pl.reciprocal(denom, approx=True)    # EUP path
            inv = inv * (2.0 - denom * inv)            # one Newton step -> f32 acc.
            o_ref[...] = ez * inv


def prepare_params(weights, biases):
    """Pad/cast parameters ONCE (outside the jitted forward).

    Weights -> bf16, zero-padded to (_pad_dim(m), _pad_dim(n)).
    Biases  -> f32 (1, n_pad); the LAST bias pads with -1e30 so padded softmax
    lanes contribute exactly 0 to the denominator.
    """
    n_layers = len(weights)
    dims = [weights[0].shape[0]] + [w.shape[1] for w in weights]
    dims_pad = [_pad_dim(d) for d in dims]

    ws_p, bs_p = [], []
    for i, (w, b) in enumerate(zip(weights, biases)):
        m, n = w.shape
        w_p = jnp.pad(w.astype(jnp.float32),
                      ((0, dims_pad[i] - m), (0, dims_pad[i + 1] - n)))
        ws_p.append(w_p.astype(jnp.bfloat16))
        pad_val = _NEG_PAD if i == n_layers - 1 else 0.0
        b_p = jnp.pad(b.astype(jnp.float32), (0, dims_pad[i + 1] - n),
                      constant_values=pad_val).reshape(1, dims_pad[i + 1])
        bs_p.append(b_p)
    return tuple(ws_p), tuple(bs_p), dims[-1]


@functools.partial(jax.jit, static_argnames=("n_out",))
def _forward_impl(x, ws_p, bs_p, *, n_out):
    x = x.astype(jnp.float32)
    n_layers = len(ws_p)
    batch, d_in = x.shape
    dims_pad = [ws_p[0].shape[0]] + [w.shape[1] for w in ws_p]

    # ---- batch tiling ----------------------------------------------------
    if batch < 2 * _SUBLANE:
        tile = _round_up(batch, _SUBLANE)                 # tiny batch: one tile
    elif batch <= _BATCH_TILE:
        # >=2 grid steps so both v7x TensorCores get work on medium batches.
        tile = _round_up((batch + 1) // 2, _SUBLANE)
    else:
        tile = _BATCH_TILE

    # ---- VMEM budget guard (v7x: 64 MiB physical, 32 MiB scoped default) --
    weight_bytes = (sum(w.size * 2 for w in ws_p)          # bf16, Buffered(1)
                    + sum(b.size * 4 for b in bs_p))

    def _io_bytes(t):
        return (2 * t * dims_pad[0] * 4                    # double-buffered input
                + 2 * t * dims_pad[-1] * 4                 # double-buffered output
                + 2 * t * max(dims_pad) * 4)               # activation headroom

    while tile > _SUBLANE and weight_bytes + _io_bytes(tile) > _VMEM_BUDGET:
        tile = _round_up(tile // 2, _SUBLANE)
    # TODO(synk): if the padded weights alone exceed the budget, stream them per
    # layer (pltpu.emit_pipeline over layers) instead of keeping all resident.

    batch_pad = _round_up(batch, tile)
    grid = (batch_pad // tile,)

    x_p = jnp.pad(x, ((0, batch_pad - batch), (0, dims_pad[0] - d_in)))

    # ---- specs -------------------------------------------------------------
    in_specs = [pl.BlockSpec((tile, dims_pad[0]), lambda i: (i, 0))]
    for li in range(n_layers):
        # Constant index_map: the block never changes across the grid, so a
        # single buffer halves the parameters' VMEM footprint.
        in_specs.append(pl.BlockSpec((dims_pad[li], dims_pad[li + 1]),
                                     lambda i: (0, 0),
                                     pipeline_mode=pl.Buffered(1)))
        in_specs.append(pl.BlockSpec((1, dims_pad[li + 1]),
                                     lambda i: (0, 0),
                                     pipeline_mode=pl.Buffered(1)))
    out_spec = pl.BlockSpec((tile, dims_pad[-1]), lambda i: (i, 0))

    flops = 2 * batch_pad * sum(dims_pad[i] * dims_pad[i + 1]
                                for i in range(n_layers))
    bytes_accessed = (4 * batch_pad * dims_pad[0] + 4 * batch_pad * dims_pad[-1]
                      + sum(2 * dims_pad[i] * dims_pad[i + 1] + 4 * dims_pad[i + 1]
                            for i in range(n_layers)))
    cost = pl.CostEstimate(flops=flops,
                           transcendentals=batch_pad * dims_pad[-1],
                           bytes_accessed=bytes_accessed)

    vmem_limit = int(min(48 << 20,
                         max(32 << 20, 2 * (weight_bytes + _io_bytes(tile)))))

    params = []
    for w, b in zip(ws_p, bs_p):
        params.extend([w, b])

    kernel = functools.partial(_fused_mlp_kernel, n_layers=n_layers)

    out_p = pl.pallas_call(
        kernel,
        out_shape=jax.ShapeDtypeStruct((batch_pad, dims_pad[-1]), jnp.float32),
        grid=grid,
        in_specs=in_specs,
        out_specs=out_spec,
        cost_estimate=cost,
        compiler_params=pltpu.CompilerParams(
            dimension_semantics=("parallel",),
            vmem_limit_bytes=vmem_limit),
    )(x_p, *params)

    return out_p[:batch, :n_out]


def make_forward(weights, biases):
    """Pad params once, return a jitted forward(x) closure."""
    ws_p, bs_p, n_out = prepare_params(weights, biases)

    def forward(x):
        return _forward_impl(x, ws_p, bs_p, n_out=n_out)

    return forward


def init_params(key, layers, scale=0.1):
    """Deterministic parameter init mirroring scale * torch.randn(...)."""
    weights, biases = [], []
    for m, n in zip(layers[:-1], layers[1:]):
        key, kw, kb = jax.random.split(key, 3)
        weights.append(scale * jax.random.normal(kw, (m, n), dtype=jnp.float32))
        biases.append(scale * jax.random.normal(kb, (n,), dtype=jnp.float32))
    return weights, biases


if __name__ == "__main__":
    # Default module configuration: layers=[2, 100, 2], scale=0.1
    layers = [2, 100, 2]
    batch = 8

    key = jax.random.PRNGKey(0)
    key, kx = jax.random.split(key)
    x = jax.random.normal(kx, (batch, layers[0]), dtype=jnp.float32)

    weights, biases = init_params(key, layers, scale=0.1)

    forward = make_forward(weights, biases)
    out = jax.block_until_ready(forward(x))

    # Sanity: shape and softmax row sums.
    assert out.shape == (batch, layers[-1])
    assert jnp.allclose(jnp.sum(out, axis=1), 1.0, atol=1e-5)

    # Pure-JAX f32 reference. The kernel's matmuls run in bf16 on the MXU
    # (f32 accumulation), so the comparison tolerance is loosened accordingly.
    ref = x
    for i, (w, b) in enumerate(zip(weights, biases)):
        z = ref @ w + b
        if i < len(weights) - 1:
            ref = jnp.maximum(z, 0.0)
        else:
            ez = jnp.exp(z)
            ref = ez / jnp.sum(ez, axis=1, keepdims=True)
    assert jnp.allclose(out, ref, atol=2e-2, rtol=2e-2)

    print("KERNEL_OK")
</pallas_src>

<mosaic_0001>
module attributes {stable_mosaic.version = 11 : i64} {
  func.func @_fused_mlp_kernel(%arg0: i32, %arg1: memref<8x128xf32, #tpu.memory_space<vmem>>, %arg2: memref<128x128xbf16, #tpu.memory_space<vmem>>, %arg3: memref<1x128xf32, #tpu.memory_space<vmem>>, %arg4: memref<128x128xbf16, #tpu.memory_space<vmem>>, %arg5: memref<1x128xf32, #tpu.memory_space<vmem>>, %arg6: memref<8x128xf32, #tpu.memory_space<vmem>>) attributes {dimension_semantics = [#tpu.dimension_semantics<parallel>], iteration_bounds = array<i64: 1>, scalar_prefetch = 0 : i64, scratch_operands = 0 : i64, tpu.core_type = #tpu.core_type<tc>, window_params = [{transform_indices = @transform_0, window_bounds = array<i64: 8, 128>}, {pipeline_mode = #tpu.pipeline_mode<synchronous>, transform_indices = @transform_1, window_bounds = array<i64: 128, 128>}, {pipeline_mode = #tpu.pipeline_mode<synchronous>, transform_indices = @transform_2, window_bounds = array<i64: 1, 128>}, {pipeline_mode = #tpu.pipeline_mode<synchronous>, transform_indices = @transform_3, window_bounds = array<i64: 128, 128>}, {pipeline_mode = #tpu.pipeline_mode<synchronous>, transform_indices = @transform_4, window_bounds = array<i64: 1, 128>}, {transform_indices = @transform_5, window_bounds = array<i64: 8, 128>}]} {
    %c0 = arith.constant 0 : index
    %c0_0 = arith.constant 0 : index
    %0 = vector.load %arg1[%c0, %c0_0] : memref<8x128xf32, #tpu.memory_space<vmem>>, vector<8x128xf32>
    %1 = arith.truncf %0 : vector<8x128xf32> to vector<8x128xbf16>
    %c0_1 = arith.constant 0 : index
    %c0_2 = arith.constant 0 : index
    %2 = vector.load %arg2[%c0_1, %c0_2] : memref<128x128xbf16, #tpu.memory_space<vmem>>, vector<128x128xbf16>
    %cst = arith.constant dense<0.000000e+00> : vector<8x128xf32>
    %3 = tpu.matmul %1, %2, %cst {dimension_numbers = #tpu.dot_dimension_numbers<[1], [0], [0], [1], [0, 0, 1, 1], [], []>} : vector<8x128xbf16>, vector<128x128xbf16>, vector<8x128xf32> -> vector<8x128xf32>
    %c0_3 = arith.constant 0 : index
    %c0_4 = arith.constant 0 : index
    %4 = vector.load %arg3[%c0_3, %c0_4] : memref<1x128xf32, #tpu.memory_space<vmem>>, vector<1x128xf32>
    %5 = vector.broadcast %4 : vector<1x128xf32> to vector<8x128xf32>
    %6 = arith.addf %3, %5 : vector<8x128xf32>
    %cst_5 = arith.constant 0.000000e+00 : f32
    %7 = vector.broadcast %cst_5 : f32 to vector<8x128xf32>
    %8 = arith.maximumf %6, %7 : vector<8x128xf32>
    %9 = arith.truncf %8 : vector<8x128xf32> to vector<8x128xbf16>
    %c0_6 = arith.constant 0 : index
    %c0_7 = arith.constant 0 : index
    %10 = vector.load %arg4[%c0_6, %c0_7] : memref<128x128xbf16, #tpu.memory_space<vmem>>, vector<128x128xbf16>
    %cst_8 = arith.constant dense<0.000000e+00> : vector<8x128xf32>
    %11 = tpu.matmul %9, %10, %cst_8 {dimension_numbers = #tpu.dot_dimension_numbers<[1], [0], [0], [1], [0, 0, 1, 1], [], []>} : vector<8x128xbf16>, vector<128x128xbf16>, vector<8x128xf32> -> vector<8x128xf32>
    %c0_9 = arith.constant 0 : index
    %c0_10 = arith.constant 0 : index
    %12 = vector.load %arg5[%c0_9, %c0_10] : memref<1x128xf32, #tpu.memory_space<vmem>>, vector<1x128xf32>
    %13 = vector.broadcast %12 : vector<1x128xf32> to vector<8x128xf32>
    %14 = arith.addf %11, %13 : vector<8x128xf32>
    %cst_11 = arith.constant dense<0xFF800000> : vector<8xf32>
    %15 = vector.multi_reduction <maximumf>, %14, %cst_11 [1] : vector<8x128xf32> to vector<8xf32>
    %16 = vector.shape_cast %15 : vector<8xf32> to vector<8x1xf32>
    %17 = vector.broadcast %16 : vector<8x1xf32> to vector<8x128xf32>
    %18 = arith.subf %14, %17 : vector<8x128xf32>
    %19 = math.exp %18 : vector<8x128xf32>
    %cst_12 = arith.constant dense<0.000000e+00> : vector<8xf32>
    %20 = vector.multi_reduction <add>, %19, %cst_12 [1] : vector<8x128xf32> to vector<8xf32>
    %21 = vector.shape_cast %20 : vector<8xf32> to vector<8x1xf32>
    %22 = tpu.reciprocal %21 {approx = true} : vector<8x1xf32> -> vector<8x1xf32>
    %23 = arith.mulf %21, %22 : vector<8x1xf32>
    %cst_13 = arith.constant 2.000000e+00 : f32
    %24 = vector.broadcast %cst_13 : f32 to vector<8x1xf32>
    %25 = arith.subf %24, %23 : vector<8x1xf32>
    %26 = arith.mulf %22, %25 : vector<8x1xf32>
    %27 = vector.broadcast %26 : vector<8x1xf32> to vector<8x128xf32>
    %28 = arith.mulf %19, %27 : vector<8x128xf32>
    %c0_14 = arith.constant 0 : index
    %c0_15 = arith.constant 0 : index
    %29 = vector.load %arg6[%c0_14, %c0_15] : memref<8x128xf32, #tpu.memory_space<vmem>>, vector<8x128xf32>
    tpu.vector_store %arg6[%c0_14, %c0_15], %28 {strides = array<i32>} : memref<8x128xf32, #tpu.memory_space<vmem>>, vector<8x128xf32>,
    return
  }
  func.func @transform_0(%arg0: i32) -> (i32, i32) {
    %c0_i32 = arith.constant 0 : i32
    %c0_i32_0 = arith.constant 0 : i32
    return %arg0, %c0_i32 : i32, i32
  }
  func.func @transform_1(%arg0: i32) -> (i32, i32) {
    %c0_i32 = arith.constant 0 : i32
    %c0_i32_0 = arith.constant 0 : i32
    %c0_i32_1 = arith.constant 0 : i32
    return %c0_i32, %c0_i32_0 : i32, i32
  }
  func.func @transform_2(%arg0: i32) -> (i32, i32) {
    %c0_i32 = arith.constant 0 : i32
    %c0_i32_0 = arith.constant 0 : i32
    %c0_i32_1 = arith.constant 0 : i32
    return %c0_i32, %c0_i32_0 : i32, i32
  }
  func.func @transform_3(%arg0: i32) -> (i32, i32) {
    %c0_i32 = arith.constant 0 : i32
    %c0_i32_0 = arith.constant 0 : i32
    %c0_i32_1 = arith.constant 0 : i32
    return %c0_i32, %c0_i32_0 : i32, i32
  }
  func.func @transform_4(%arg0: i32) -> (i32, i32) {
    %c0_i32 = arith.constant 0 : i32
    %c0_i32_0 = arith.constant 0 : i32
    %c0_i32_1 = arith.constant 0 : i32
    return %c0_i32, %c0_i32_0 : i32, i32
  }
  func.func @transform_5(%arg0: i32) -> (i32, i32) {
    %c0_i32 = arith.constant 0 : i32
    %c0_i32_0 = arith.constant 0 : i32
    return %arg0, %c0_i32 : i32, i32
  }
}

</mosaic_0001>

<llo_original>
// kernel: _forward_impl.1
$region0: #{_forward_impl.1}
  #allocation0 [shape = 'u32[]', space=smem, size = 0x4, offset = 0x4, fixed_abs, tag = 'smem constant byte address 0x4 - core index']
  #allocation1 [shape = 'u32[144,128]{1,0:T(1,128)}', space=vmem, size = 0x12000, scoped, tag = 'internal scratch']
  %s0 = inlined_call_operand.vmem [shape: f32[8,128], index: 0, kind: input, shape index: {}]
  %s1 = inlined_call_operand.hbm [shape: bf16[128,128], index: 1, kind: input, shape index: {}]
  %s2 = inlined_call_operand.vmem [shape: f32[1,128], index: 2, kind: input, shape index: {}]
  %s3 = inlined_call_operand.hbm [shape: bf16[128,128], index: 3, kind: input, shape index: {}]
  %s4 = inlined_call_operand.vmem [shape: f32[1,128], index: 4, kind: input, shape index: {}]
  %s5 = inlined_call_operand.vmem [shape: f32[8,128], index: 5, kind: output, shape index: {}]
  %s6 = sld [smem:[#allocation0]]
  $region38: #{_forward_impl.1} parent=0
    _
  %s8 = ssub.s32 1, %s6
  %s9 = scalar_select 0, %s8, %s6
  $region1: #{_forward_impl.1} parent=0
    #allocation2 [shape = 'u8[32768]{0}', space=vmem, size = 0x8000, scoped, tag = 'input window, operand 1, single buffered']
    #allocation3 [shape = 's32[1]{0}', space=sflag, size = 0x4, scoped, tag = 'scoped memory for _forward_impl.1']
    #allocation4 [shape = 'u8[32768]{0}', space=vmem, size = 0x8000, scoped, tag = 'input window, operand 3, single buffered']
    #allocation5 [shape = 's32[1]{0}', space=sflag, size = 0x4, scoped, tag = 'scoped memory for _forward_impl.1']
    %10 = vsyncpa [#allocation3], 0
    %11 = vsyncpa [#allocation5], 0
    // Predicated region
    $region2: #{_forward_impl.1} parent=1 // pred_check
      _
    $region3: #{_forward_impl.1} parent=1 // pred_check_branch
      %13 = sbr.rel (0) target = $region5
    $region4: #{_forward_impl.1} parent=1 // pred_region
      _
    $region5: #{_forward_impl.1} parent=1 // pred_fallthru
      _
    // Predicated region
    $region6: #{_forward_impl.1} parent=1 // pred_check
      _
    $region7: #{_forward_impl.1} parent=1 // pred_check_branch
      %15 = sbr.rel (0) target = $region9
    $region8: #{_forward_impl.1} parent=1 // pred_region
      %s17 = ssub.s32 1024, 1024
      %18 = vsyncadd [#allocation3], %s17
      %s19 = sshll.u32 [#allocation2], 4
      %s20 = int_to_ptr.vmem [resolvable:$true] %s19
      %25 = dma.hbm_to_vmem [thread:$0]  %s1, 1024, %s20, [#allocation3], 64, 64, 4
    $region9: #{_forward_impl.1} parent=1 // pred_fallthru
      _
    // Predicated region
    $region10: #{_forward_impl.1} parent=1 // pred_check
      _
    $region11: #{_forward_impl.1} parent=1 // pred_check_branch
      %27 = sbr.rel (0) target = $region13
    $region12: #{_forward_impl.1} parent=1 // pred_region
      _
    $region13: #{_forward_impl.1} parent=1 // pred_fallthru
      _
    // Predicated region
    $region14: #{_forward_impl.1} parent=1 // pred_check
      _
    $region15: #{_forward_impl.1} parent=1 // pred_check_branch
      %29 = sbr.rel (0) target = $region17
    $region16: #{_forward_impl.1} parent=1 // pred_region
      %s31 = ssub.s32 1024, 1024
      %32 = vsyncadd [#allocation5], %s31
      %s33 = sshll.u32 [#allocation4], 4
      %s34 = int_to_ptr.vmem [resolvable:$true] %s33
      %39 = dma.hbm_to_vmem [thread:$0]  %s3, 1024, %s34, [#allocation5], 64, 64, 4
    $region17: #{_forward_impl.1} parent=1 // pred_fallthru
      _
    // Predicated region
    $region18: #{_forward_impl.1} parent=1 // pred_check
      _
    $region19: #{_forward_impl.1} parent=1 // pred_check_branch
      %41 = sbr.rel (0) target = $region21
    $region20: #{_forward_impl.1} parent=1 // pred_region
      _
    $region21: #{_forward_impl.1} parent=1 // pred_fallthru
      _
    // Predicated region
    $region22: #{_forward_impl.1} parent=1 // pred_check
      _
    $region23: #{_forward_impl.1} parent=1 // pred_check_branch
      %43 = sbr.rel (0) target = $region25
    $region24: #{_forward_impl.1} parent=1 // pred_region
      %44 = dma.done [#allocation3], 1024
    $region25: #{_forward_impl.1} parent=1 // pred_fallthru
      _
    // Predicated region
    $region26: #{_forward_impl.1} parent=1 // pred_check
      _
    $region27: #{_forward_impl.1} parent=1 // pred_check_branch
      %46 = sbr.rel (0) target = $region29
    $region28: #{_forward_impl.1} parent=1 // pred_region
      %47 = dma.done [#allocation5], 1024
    $region29: #{_forward_impl.1} parent=1 // pred_fallthru
      _
    %v49 = vld [vmem:[%s0] sm:$0xff]
    %v50 = vpack.c.bf16 %v49, %v49
    %v51 = vld [vmem:[#allocation2] sm:$0xf]
    %v52 = vld [vmem:[#allocation2 + $0x4] sm:$0xf]
    %v53 = vld [vmem:[#allocation2 + $0x8] sm:$0xf]
    %v54 = vld [vmem:[#allocation2 + $0xc] sm:$0xf]
    %v55 = vld [vmem:[#allocation2 + $0x10] sm:$0xf]
    %v56 = vld [vmem:[#allocation2 + $0x14] sm:$0xf]
    %v57 = vld [vmem:[#allocation2 + $0x18] sm:$0xf]
    %v58 = vld [vmem:[#allocation2 + $0x1c] sm:$0xf]
    %v59 = vld [vmem:[#allocation2 + $0x20] sm:$0xf]
    %v60 = vld [vmem:[#allocation2 + $0x24] sm:$0xf]
    %v61 = vld [vmem:[#allocation2 + $0x28] sm:$0xf]
    %v62 = vld [vmem:[#allocation2 + $0x2c] sm:$0xf]
    %v63 = vld [vmem:[#allocation2 + $0x30] sm:$0xf]
    %v64 = vld [vmem:[#allocation2 + $0x34] sm:$0xf]
    %v65 = vld [vmem:[#allocation2 + $0x38] sm:$0xf]
    %v66 = vld [vmem:[#allocation2 + $0x3c] sm:$0xf]
    %v67 = vld [vmem:[%s2] sm:$0x1]
    %v69 = vlaneseq
    %v70 = vshrl.u32 %v69, 7
    %v71 = vsub.s32 0, %v70
    %v72 = vrot.slane %v67, %v71
    %v90 = vunpack.c.l.b16 %v51
    %v91 = vunpack.c.l.b16 %v52
    %v92 = vunpack.c.l.b16 %v53
    %v93 = vunpack.c.l.b16 %v54
    %v94 = vunpack.c.l.b16 %v55
    %v95 = vunpack.c.l.b16 %v56
    %v96 = vunpack.c.l.b16 %v57
    %v97 = vunpack.c.l.b16 %v58
    %v98 = vunpack.c.l.b16 %v59
    %v99 = vunpack.c.l.b16 %v60
    %v100 = vunpack.c.l.b16 %v61
    %v101 = vunpack.c.l.b16 %v62
    %v102 = vunpack.c.l.b16 %v63
    %v103 = vunpack.c.l.b16 %v64
    %v104 = vunpack.c.l.b16 %v65
    %v105 = vunpack.c.l.b16 %v66
    %v106 = vpack.c.b16 %v91, %v90
    %v107 = vpack.c.b16 %v93, %v92
    %v108 = vpack.c.b16 %v95, %v94
    %v109 = vpack.c.b16 %v97, %v96
    %v110 = vpack.c.b16 %v99, %v98
    %v111 = vpack.c.b16 %v101, %v100
    %v112 = vpack.c.b16 %v103, %v102
    %v113 = vpack.c.b16 %v105, %v104
    %122 = vmatprep.subr.bf16.mxu0 0
    %123 = vmatpush1.bf16.msra.mxu0 %v106
    %124 = vmatprep.subr.bf16.mxu0 0
    %125 = vmatpush1.bf16.msra.mxu0 %v107
    %126 = vmatprep.subr.bf16.mxu0 0
    %127 = vmatpush1.bf16.msra.mxu0 %v108
    %128 = vmatprep.subr.bf16.mxu0 0
    %129 = vmatpush1.bf16.msra.mxu0 %v109
    %130 = vmatprep.subr.bf16.mxu0 0
    %131 = vmatpush1.bf16.msra.mxu0 %v110
    %132 = vmatprep.subr.bf16.mxu0 0
    %133 = vmatpush1.bf16.msra.mxu0 %v111
    %134 = vmatprep.subr.bf16.mxu0 0
    %135 = vmatpush1.bf16.msra.mxu0 %v112
    %136 = vmatprep.subr.bf16.mxu0 0
    %137 = vmatpush1.bf16.msra.mxu0 %v113
    %138 = vmatprep.subr.bf16.mxu0 0
    %139 = vmatpush1.bf16.msra.mxu0 0
    %140 = vmatprep.subr.bf16.mxu0 0
    %141 = vmatpush1.bf16.msra.mxu0 0
    %142 = vmatprep.subr.bf16.mxu0 0
    %143 = vmatpush1.bf16.msra.mxu0 0
    %144 = vmatprep.subr.bf16.mxu0 0
    %145 = vmatpush1.bf16.msra.mxu0 0
    %146 = vmatprep.subr.bf16.mxu0 0
    %147 = vmatpush1.bf16.msra.mxu0 0
    %148 = vmatprep.subr.bf16.mxu0 0
    %149 = vmatpush1.bf16.msra.mxu0 0
    %150 = vmatprep.subr.bf16.mxu0 0
    %151 = vmatpush1.bf16.msra.mxu0 0
    %152 = vmatprep.subr.bf16.mxu0 0
    %153 = vmatpush1.bf16.msra.mxu0 0
    %154 = vmatprep.mubr.bf16.mxu0 0
    %155 = vmatmul.mubr.bf16.gmra.mrb[0].mxu0 %v50
    %v156 = vpop.f32.mrb[0].mxu0
    %v157 = vadd.f32 %v72, %v156
    %v158 = vpop.f32.mrb[0].mxu0
    %v159 = vpop.f32.mrb[0].mxu0
    %v160 = vpop.f32.mrb[0].mxu0
    %161 = vdwg.mxu0
    %v162 = vmax.f32 %v157, 0.0
    %v163 = vpack.c.bf16 %v162, %v162
    %v164 = vld [vmem:[#allocation4] sm:$0xf]
    %v165 = vld [vmem:[#allocation4 + $0x4] sm:$0xf]
    %v166 = vld [vmem:[#allocation4 + $0x8] sm:$0xf]
    %v167 = vld [vmem:[#allocation4 + $0xc] sm:$0xf]
    %v168 = vld [vmem:[#allocation4 + $0x10] sm:$0xf]
    %v169 = vld [vmem:[#allocation4 + $0x14] sm:$0xf]
    %v170 = vld [vmem:[#allocation4 + $0x18] sm:$0xf]
    %v171 = vld [vmem:[#allocation4 + $0x1c] sm:$0xf]
    %v172 = vld [vmem:[#allocation4 + $0x20] sm:$0xf]
    %v173 = vld [vmem:[#allocation4 + $0x24] sm:$0xf]
    %v174 = vld [vmem:[#allocation4 + $0x28] sm:$0xf]
    %v175 = vld [vmem:[#allocation4 + $0x2c] sm:$0xf]
    %v176 = vld [vmem:[#allocation4 + $0x30] sm:$0xf]
    %v177 = vld [vmem:[#allocation4 + $0x34] sm:$0xf]
    %v178 = vld [vmem:[#allocation4 + $0x38] sm:$0xf]
    %v179 = vld [vmem:[#allocation4 + $0x3c] sm:$0xf]
    %v180 = vld [vmem:[%s4] sm:$0x1]
    %v182 = vlaneseq
    %v183 = vshrl.u32 %v182, 7
    %v184 = vsub.s32 0, %v183
    %v185 = vrot.slane %v180, %v184
    %v203 = vunpack.c.l.b16 %v164
    %v204 = vunpack.c.l.b16 %v165
    %v205 = vunpack.c.l.b16 %v166
    %v206 = vunpack.c.l.b16 %v167
    %v207 = vunpack.c.l.b16 %v168
    %v208 = vunpack.c.l.b16 %v169
    %v209 = vunpack.c.l.b16 %v170
    %v210 = vunpack.c.l.b16 %v171
    %v211 = vunpack.c.l.b16 %v172
    %v212 = vunpack.c.l.b16 %v173
    %v213 = vunpack.c.l.b16 %v174
    %v214 = vunpack.c.l.b16 %v175
    %v215 = vunpack.c.l.b16 %v176
    %v216 = vunpack.c.l.b16 %v177
    %v217 = vunpack.c.l.b16 %v178
    %v218 = vunpack.c.l.b16 %v179
    %v219 = vpack.c.b16 %v204, %v203
    %v220 = vpack.c.b16 %v206, %v205
    %v221 = vpack.c.b16 %v208, %v207
    %v222 = vpack.c.b16 %v210, %v209
    %v223 = vpack.c.b16 %v212, %v211
    %v224 = vpack.c.b16 %v214, %v213
    %v225 = vpack.c.b16 %v216, %v215
    %v226 = vpack.c.b16 %v218, %v217
    %235 = vmatprep.subr.bf16.mxu0 0
    %236 = vmatpush1.bf16.msra.mxu0 %v219
    %237 = vmatprep.subr.bf16.mxu0 0
    %238 = vmatpush1.bf16.msra.mxu0 %v220
    %239 = vmatprep.subr.bf16.mxu0 0
    %240 = vmatpush1.bf16.msra.mxu0 %v221
    %241 = vmatprep.subr.bf16.mxu0 0
    %242 = vmatpush1.bf16.msra.mxu0 %v222
    %243 = vmatprep.subr.bf16.mxu0 0
    %244 = vmatpush1.bf16.msra.mxu0 %v223
    %245 = vmatprep.subr.bf16.mxu0 0
    %246 = vmatpush1.bf16.msra.mxu0 %v224
    %247 = vmatprep.subr.bf16.mxu0 0
    %248 = vmatpush1.bf16.msra.mxu0 %v225
    %249 = vmatprep.subr.bf16.mxu0 0
    %250 = vmatpush1.bf16.msra.mxu0 %v226
    %251 = vmatprep.subr.bf16.mxu0 0
    %252 = vmatpush1.bf16.msra.mxu0 0
    %253 = vmatprep.subr.bf16.mxu0 0
    %254 = vmatpush1.bf16.msra.mxu0 0
    %255 = vmatprep.subr.bf16.mxu0 0
    %256 = vmatpush1.bf16.msra.mxu0 0
    %257 = vmatprep.subr.bf16.mxu0 0
    %258 = vmatpush1.bf16.msra.mxu0 0
    %259 = vmatprep.subr.bf16.mxu0 0
    %260 = vmatpush1.bf16.msra.mxu0 0
    %261 = vmatprep.subr.bf16.mxu0 0
    %262 = vmatpush1.bf16.msra.mxu0 0
    %263 = vmatprep.subr.bf16.mxu0 0
    %264 = vmatpush1.bf16.msra.mxu0 0
    %265 = vmatprep.subr.bf16.mxu0 0
    %266 = vmatpush1.bf16.msra.mxu0 0
    %267 = vmatprep.mubr.bf16.mxu0 0
    %268 = vmatmul.mubr.bf16.gmra.mrb[0].mxu0 %v163
    %v269 = vpop.f32.mrb[0].mxu0
    %v270 = vadd.f32 %v185, %v269
    %v271 = vpop.f32.mrb[0].mxu0
    %v272 = vpop.f32.mrb[0].mxu0
    %v273 = vpop.f32.mrb[0].mxu0
    %274 = vdwg.mxu0
    %275 = vmax.xlane.f32.xlu0 %v270
    %v276 = vpop.xlane.xlu0 %275
    %v277 = vsub.f32 %v270, %v276
    %v278 = vmul.f32 %v277, 1.442695
    %v279 = vpow.pop %v278
    %280 = vadd.xlane.f32.xlu0 %v279
    %v281 = vpop.xlane.xlu0 %280
    %v282 = vrcp.pop %v281
    %v283 = vmul.f32 %v281, %v282
    %v284 = vsub.f32 2.0, %v283
    %v285 = vmul.f32 %v282, %v284
    %v286 = vmul.f32 %v279, %v285
    %287 = vst [vmem:[%s5] sm:$0xff] %v286
    // Predicated region
    $region30: #{_forward_impl.1} parent=1 // pred_check
      _
    $region31: #{_forward_impl.1} parent=1 // pred_check_branch
      %289 = sbr.rel (0) target = $region33
    $region32: #{_forward_impl.1} parent=1 // pred_region
      _
    $region33: #{_forward_impl.1} parent=1 // pred_fallthru
      _
    // Predicated region
    $region34: #{_forward_impl.1} parent=1 // pred_check
      _
    $region35: #{_forward_impl.1} parent=1 // pred_check_branch
      %291 = sbr.rel (0) target = $region37
    $region36: #{_forward_impl.1} parent=1 // pred_region
      _
    $region37: #{_forward_impl.1} parent=1 // pred_fallthru
      _
    %292 = vsyncpa [#allocation3], 1
    %293 = vsyncpa [#allocation5], 1

</llo_original>
